<compile_context>
chip_gen: v6e
topology: v6e:2x2x1
jax: 0.10.0
libtpu: 0.0.40
codegen_flags: <defaults>
</compile_context>

<pallas_src>
import functools

import jax
import jax.numpy as jnp
from jax.experimental import pallas as pl
from jax.experimental.pallas import tpu as pltpu

M_MARGIN = 0.3
S_SCALE = 20.0


def am_softmax_kernel(costh_ref, tgt_ref, out_ref, *, m, s):
    costh = costh_ref[...].astype(jnp.float32)            # (tile_n, C) f32
    tgt = tgt_ref[...]                                     # (tile_n, 1) int32
    tn, c = costh.shape

    # one-hot mask of the target class per row (single, loop-free iota per tile)
    col = jax.lax.broadcasted_iota(jnp.int32, (tn, c), 1)
    is_tgt = col == tgt                                    # broadcast (tile_n,1)

    logits = s * (costh - jnp.where(is_tgt, jnp.float32(m), jnp.float32(0.0)))

    # per-row max shift: mathematically identical result, but safe if costh
    # ever leaves the [-1, 1] cosine range or s grows (exp overflow guard).
    row_max = jnp.max(logits, axis=1, keepdims=True)
    e = jnp.exp(logits - row_max)
    denom = jnp.sum(e, axis=1, keepdims=True)              # (tile_n, 1)
    out_ref[...] = (e * pl.reciprocal(denom, approx=False)).astype(out_ref.dtype)


def _pick_tile_n(n, c, in_itemsize, out_itemsize):
    """Largest multiple-of-8 divisor of n whose double-buffered in+out tiles fit
    a conservative VMEM budget (safe on v7x's smaller VMEM and on v5e/v6e with
    the default scoped limit)."""
    budget = 8 * 1024 * 1024                        # bytes for in+out, x2 buffers
    per_row = 2 * c * (in_itemsize + out_itemsize)
    cap = max(8, budget // max(per_row, 1))
    best = None
    t = 8
    while t <= min(n, cap, 1024):
        if n % t == 0:
            best = t
        t += 8
    return best if best is not None else n          # fall back to full-array block


def am_softmax(costh, target, *, m=M_MARGIN, s=S_SCALE, tile_n=None):
    """costh: (N, C) float, target: (N,) int -> (N, C) AM-softmax probabilities."""
    n, c = costh.shape
    target2d = target.reshape(n, 1).astype(jnp.int32)
    if tile_n is None:
        tile_n = _pick_tile_n(n, c, costh.dtype.itemsize, costh.dtype.itemsize)
    assert n % tile_n == 0, (n, tile_n)
    # TODO(synk): for very large class counts also tile C (two-pass or online
    # renormalization); full-C blocks are fine for typical AM-softmax heads.
    kernel = functools.partial(am_softmax_kernel, m=float(m), s=float(s))
    return pl.pallas_call(
        kernel,
        out_shape=jax.ShapeDtypeStruct((n, c), costh.dtype),
        grid_spec=pltpu.PrefetchScalarGridSpec(
            num_scalar_prefetch=0,
            grid=(n // tile_n,),
            in_specs=[
                pl.BlockSpec((tile_n, c), lambda i: (i, 0)),   # costh row block
                pl.BlockSpec((tile_n, 1), lambda i: (i, 0)),   # target row block
            ],
            out_specs=pl.BlockSpec((tile_n, c), lambda i: (i, 0)),
        ),
        compiler_params=pltpu.CompilerParams(
            dimension_semantics=("parallel",)),
    )(costh, target2d)


def am_softmax_ref(costh, target, m=M_MARGIN, s=S_SCALE):
    """Pure-JAX reference mirroring the PyTorch forward."""
    n, c = costh.shape
    onehot = jax.nn.one_hot(target, c, dtype=jnp.float32)
    logits = s * (costh.astype(jnp.float32) - m * onehot)
    e = jnp.exp(logits)
    return (e / jnp.sum(e, axis=1, keepdims=True)).astype(costh.dtype)


if __name__ == "__main__":
    key = jax.random.PRNGKey(0)
    k1, k2 = jax.random.split(key)

    N, C = 32, 128
    # cosine-similarity-like inputs in [-1, 1]
    costh = jax.random.uniform(k1, (N, C), jnp.float32, minval=-1.0, maxval=1.0)
    target = jax.random.randint(k2, (N,), 0, C, dtype=jnp.int32)

    out = am_softmax(costh, target, tile_n=8)    # grid=(4,): exercises pipelining
    jax.block_until_ready(out)

    ref = am_softmax_ref(costh, target)
    assert out.shape == (N, C)
    assert jnp.allclose(out, ref, rtol=1e-5, atol=1e-6), float(
        jnp.max(jnp.abs(out - ref)))

    print("KERNEL_OK")
</pallas_src>

<mosaic_0001>
module attributes {stable_mosaic.version = 11 : i64} {
  func.func @am_softmax_kernel(%arg0: i32, %arg1: memref<8x128xf32, #tpu.memory_space<vmem>>, %arg2: memref<8x1xi32, #tpu.memory_space<vmem>>, %arg3: memref<8x128xf32, #tpu.memory_space<vmem>>) attributes {dimension_semantics = [#tpu.dimension_semantics<parallel>], iteration_bounds = array<i64: 4>, scalar_prefetch = 0 : i64, scratch_operands = 0 : i64, tpu.core_type = #tpu.core_type<tc>, window_params = [{transform_indices = @transform_0, window_bounds = array<i64: 8, 128>}, {transform_indices = @transform_1, window_bounds = array<i64: 8, 1>}, {transform_indices = @transform_2, window_bounds = array<i64: 8, 128>}]} {
    %c0 = arith.constant 0 : index
    %c0_0 = arith.constant 0 : index
    %0 = vector.load %arg1[%c0, %c0_0] : memref<8x128xf32, #tpu.memory_space<vmem>>, vector<8x128xf32>
    %c0_1 = arith.constant 0 : index
    %c0_2 = arith.constant 0 : index
    %1 = vector.load %arg2[%c0_1, %c0_2] : memref<8x1xi32, #tpu.memory_space<vmem>>, vector<8x1xi32>
    %2 = tpu.iota {dimensions = array<i32: 1>} : vector<8x128xi32>
    %3 = vector.broadcast %1 : vector<8x1xi32> to vector<8x128xi32>
    %4 = arith.cmpi eq, %2, %3 : vector<8x128xi32>
    %cst = arith.constant 3.000000e-01 : f32
    %cst_3 = arith.constant 0.000000e+00 : f32
    %5 = vector.broadcast %cst : f32 to vector<8x128xf32>
    %6 = vector.broadcast %cst_3 : f32 to vector<8x128xf32>
    %7 = arith.select %4, %5, %6 : vector<8x128xi1>, vector<8x128xf32>
    %8 = arith.subf %0, %7 : vector<8x128xf32>
    %cst_4 = arith.constant 2.000000e+01 : f32
    %9 = vector.broadcast %cst_4 : f32 to vector<8x128xf32>
    %10 = arith.mulf %9, %8 : vector<8x128xf32>
    %cst_5 = arith.constant dense<0xFF800000> : vector<8xf32>
    %11 = vector.multi_reduction <maximumf>, %10, %cst_5 [1] : vector<8x128xf32> to vector<8xf32>
    %12 = vector.shape_cast %11 : vector<8xf32> to vector<8x1xf32>
    %13 = vector.broadcast %12 : vector<8x1xf32> to vector<8x128xf32>
    %14 = arith.subf %10, %13 : vector<8x128xf32>
    %15 = math.exp %14 : vector<8x128xf32>
    %cst_6 = arith.constant dense<0.000000e+00> : vector<8xf32>
    %16 = vector.multi_reduction <add>, %15, %cst_6 [1] : vector<8x128xf32> to vector<8xf32>
    %17 = vector.shape_cast %16 : vector<8xf32> to vector<8x1xf32>
    %18 = tpu.reciprocal %17 : vector<8x1xf32> -> vector<8x1xf32>
    %19 = vector.broadcast %18 : vector<8x1xf32> to vector<8x128xf32>
    %20 = arith.mulf %15, %19 : vector<8x128xf32>
    %c0_7 = arith.constant 0 : index
    %c0_8 = arith.constant 0 : index
    %21 = vector.load %arg3[%c0_7, %c0_8] : memref<8x128xf32, #tpu.memory_space<vmem>>, vector<8x128xf32>
    tpu.vector_store %arg3[%c0_7, %c0_8], %20 {strides = array<i32>} : memref<8x128xf32, #tpu.memory_space<vmem>>, vector<8x128xf32>,
    return
  }
  func.func @transform_0(%arg0: i32) -> (i32, i32) {
    %c0_i32 = arith.constant 0 : i32
    %c0_i32_0 = arith.constant 0 : i32
    return %arg0, %c0_i32 : i32, i32
  }
  func.func @transform_1(%arg0: i32) -> (i32, i32) {
    %c0_i32 = arith.constant 0 : i32
    %c0_i32_0 = arith.constant 0 : i32
    return %arg0, %c0_i32 : i32, i32
  }
  func.func @transform_2(%arg0: i32) -> (i32, i32) {
    %c0_i32 = arith.constant 0 : i32
    %c0_i32_0 = arith.constant 0 : i32
    return %arg0, %c0_i32 : i32, i32
  }
}

</mosaic_0001>

<llo_original>
// kernel: tpu_custom_call.1
$region0: #{tpu_custom_call.1}
  #allocation0 [shape = 'u32[]', space=smem, size = 0x4, offset = 0x4, fixed_abs, tag = 'smem constant byte address 0x4 - core index']
  #allocation1 [shape = 'u32[144,128]{1,0:T(1,128)}', space=vmem, size = 0x12000, scoped, tag = 'internal scratch']
  %s0 = inlined_call_operand.vmem [shape: f32[32,128], index: 0, kind: input, shape index: {}]
  %s1 = inlined_call_operand.vmem [shape: s32[32,1], index: 1, kind: input, shape index: {}]
  %s2 = inlined_call_operand.hbm [shape: f32[32,128], index: 2, kind: output, shape index: {}]
  %s3 = sld [smem:[#allocation0]]
  $region41: #{tpu_custom_call.1} parent=0
    _
  %s5 = ssub.s32 1, %s3
  %s6 = scalar_select 0, %s5, %s3
  $region1: #{tpu_custom_call.1} parent=0
    #allocation2 [shape = 'u8[8192]{0}', space=vmem, size = 0x2000, scoped, tag = 'output window, operand 0']
    #allocation3 [shape = 's32[2]{0}', space=sflag, size = 0x8, scoped, tag = 'scoped memory for tpu_custom_call.1']
    %7 = vsyncpa [#allocation3], 0
    %s8 = scalar_lea.sflag [#allocation3], 1
    %9 = vsyncpa %s8, 0
    loop: start=0, step=1, limit=6
    $region2: #{tpu_custom_call.1} parent=1 // loop_pre_header
      _
    $region3: #{tpu_custom_call.1} parent=1 // loop_header
      %s11 = sphi 0, %s15
      %p12 = scmp.ge.s32.totalorder %s11, 6
      %s21 = sphi 0, %s23
      %s24 = sphi 0, %s21
      %s25 = sphi 0, %s24
      %s41 = sphi 0, %s25
      %s47 = sphi 0, %s49
      %s50 = sphi 0, %s47
      %s51 = sphi 0, %s50
      %s67 = sphi 0, %s51
      %s73 = sphi 0, %s75
      %s76 = sphi 0, %s73
      %s77 = sphi 0, %s76
      %s93 = sphi 0, %s77
    $region4: #{tpu_custom_call.1} parent=1 // loop_header_branch
      %14 = sbr.rel (%p12) target = $region8
    $region5: #{tpu_custom_call.1} parent=1 // loop_body
      %s16 = ssub.s32 %s11, 1
      %s17 = ssub.s32 %s11, 2
      %s18 = sadd.s32 %s11, 1
      %s19 = ssub.s32 %s11, %s18
      %p20 = scmp.eq.s32.totalorder %s19, 0
      %s22 = sadd.s32 %s21, 1
      %s23 = scalar_select %p20, %s21, %s22
      %p26 = pneg %p20
      %p27 = scmp.eq.s32.totalorder %s11, 3
      %p28 = por %p26, %p27
      %p29 = scmp.ne.s32.totalorder %s21, %s24
      %p30 = scmp.eq.s32.totalorder %s11, 0
      %p31 = por %p29, %p30
      %p32 = scmp.ne.s32.totalorder %s21, %s24
      %p33 = scmp.eq.s32.totalorder %s16, 3
      %p34 = por %p32, %p33
      %p35 = scmp.ne.s32.totalorder %s24, %s25
      %p36 = scmp.eq.s32.totalorder %s16, 0
      %p37 = por %p35, %p36
      %p38 = scmp.ne.s32.totalorder %s24, %s25
      %p39 = scmp.eq.s32.totalorder %s17, 3
      %p40 = por %p38, %p39
      %p42 = scmp.ne.s32.totalorder %s25, %s41
      %p43 = scmp.eq.s32.totalorder %s17, 0
      %p44 = por %p42, %p43
      %s45 = ssub.s32 %s11, %s18
      %p46 = scmp.eq.s32.totalorder %s45, 0
      %s48 = sadd.s32 %s47, 1
      %s49 = scalar_select %p46, %s47, %s48
      %p52 = pneg %p46
      %p53 = scmp.eq.s32.totalorder %s11, 3
      %p54 = por %p52, %p53
      %p55 = scmp.ne.s32.totalorder %s47, %s50
      %p56 = scmp.eq.s32.totalorder %s11, 0
      %p57 = por %p55, %p56
      %p58 = scmp.ne.s32.totalorder %s47, %s50
      %p59 = scmp.eq.s32.totalorder %s16, 3
      %p60 = por %p58, %p59
      %p61 = scmp.ne.s32.totalorder %s50, %s51
      %p62 = scmp.eq.s32.totalorder %s16, 0
      %p63 = por %p61, %p62
      %p64 = scmp.ne.s32.totalorder %s50, %s51
      %p65 = scmp.eq.s32.totalorder %s17, 3
      %p66 = por %p64, %p65
      %p68 = scmp.ne.s32.totalorder %s51, %s67
      %p69 = scmp.eq.s32.totalorder %s17, 0
      %p70 = por %p68, %p69
      %s71 = ssub.s32 %s11, %s18
      %p72 = scmp.eq.s32.totalorder %s71, 0
      %s74 = sadd.s32 %s73, 1
      %s75 = scalar_select %p72, %s73, %s74
      %p78 = pneg %p72
      %p79 = scmp.eq.s32.totalorder %s11, 3
      %p80 = por %p78, %p79
      %p81 = scmp.ne.s32.totalorder %s73, %s76
      %p82 = scmp.eq.s32.totalorder %s11, 0
      %p83 = por %p81, %p82
      %p84 = scmp.ne.s32.totalorder %s73, %s76
      %p85 = scmp.eq.s32.totalorder %s16, 3
      %p86 = por %p84, %p85
      %p87 = scmp.ne.s32.totalorder %s76, %s77
      %p88 = scmp.eq.s32.totalorder %s16, 0
      %p89 = por %p87, %p88
      %p90 = scmp.ne.s32.totalorder %s76, %s77
      %p91 = scmp.eq.s32.totalorder %s17, 3
      %p92 = por %p90, %p91
      %p94 = scmp.ne.s32.totalorder %s77, %s93
      %p95 = scmp.eq.s32.totalorder %s17, 0
      %p96 = por %p94, %p95
      %p97 = scmp.le.s32.totalorder 1, %s11
      %p98 = scmp.lt.s32.totalorder %s11, 5
      %p99 = pnand %p97, %p98
      %p100 = pneg %p99
      // Predicated region
      $region9: #{tpu_custom_call.1} parent=5 // pred_check
        _
      $region10: #{tpu_custom_call.1} parent=5 // pred_check_branch
        %102 = sbr.rel (%p99) target = $region12
      $region11: #{tpu_custom_call.1} parent=5 // pred_region
        %s103 = ssub.s32 %s11, 1
      $region12: #{tpu_custom_call.1} parent=5 // pred_fallthru
        _
      %p104 = scmp.lt.s32.totalorder %s11, 4
      // Predicated region
      $region13: #{tpu_custom_call.1} parent=5 // pred_check
        %p105 = pneg %p104
      $region14: #{tpu_custom_call.1} parent=5 // pred_check_branch
        %107 = sbr.rel (%p105) target = $region16
      $region15: #{tpu_custom_call.1} parent=5 // pred_region
        // Predicated region
        $region17: #{tpu_custom_call.1} parent=15 // pred_check
          %p108 = pneg %p31
        $region18: #{tpu_custom_call.1} parent=15 // pred_check_branch
          %110 = sbr.rel (%p108) target = $region20
        $region19: #{tpu_custom_call.1} parent=15 // pred_region
          %p111 = scmp.lt.s32.totalorder %s11, 3
          %s112 = scalar_select %p111, %s11, 3
          %s113 = smul.addr %s112, 8
          %s114 = scalar_lea.vmem %s0, %s113
        $region20: #{tpu_custom_call.1} parent=15 // pred_fallthru
          _
        // Predicated region
        $region21: #{tpu_custom_call.1} parent=15 // pred_check
          %p115 = pneg %p57
        $region22: #{tpu_custom_call.1} parent=15 // pred_check_branch
          %117 = sbr.rel (%p115) target = $region24
        $region23: #{tpu_custom_call.1} parent=15 // pred_region
          %p118 = scmp.lt.s32.totalorder %s11, 3
          %s119 = scalar_select %p118, %s11, 3
          %s120 = smul.addr %s119, 8
          %s121 = scalar_lea.vmem %s1, %s120
        $region24: #{tpu_custom_call.1} parent=15 // pred_fallthru
          _
      $region16: #{tpu_custom_call.1} parent=5 // pred_fallthru
        _
      %p122 = scmp.le.s32.totalorder 1, %s11
      %p123 = scmp.lt.s32.totalorder %s11, 5
      %p124 = pnand %p122, %p123
      %p125 = pneg %p124
      // Predicated region
      $region25: #{tpu_custom_call.1} parent=5 // pred_check
        _
      $region26: #{tpu_custom_call.1} parent=5 // pred_check_branch
        %127 = sbr.rel (%p124) target = $region28
      $region27: #{tpu_custom_call.1} parent=5 // pred_region
        %s128 = ssub.s32 %s11, 1
        %p129 = scmp.lt.s32.totalorder %s16, 3
        %s130 = scalar_select %p129, %s16, 3
        %s131 = smul.addr %s130, 8
        %s132 = scalar_lea.vmem %s0, %s131
        %p133 = pneg %p37
        %p134 = pneg %p34
        %p135 = scmp.lt.s32.totalorder %s16, 3
        %s136 = scalar_select %p135, %s16, 3
        %s137 = smul.addr %s136, 8
        %s138 = scalar_lea.vmem %s1, %s137
        %p139 = pneg %p63
        %p140 = pneg %p60
        %p141 = pneg %p89
        %p142 = pneg %p86
        %s143 = sand.u32 %s76, 1
        %s144 = scalar_lea.sflag [#allocation3], %s143
        %s145 = sand.u32 %s76, 1
        %s146 = smul.addr %s145, 8
        %s147 = scalar_lea.vmem [#allocation2], %s146
        %p148 = scmp.lt.s32.totalorder %s16, 3
        %s149 = scalar_select %p148, %s16, 3
        %s150 = smul.addr %s149, 8
        %s151 = scalar_lea.vmem %s0, %s150
        %p152 = scmp.lt.s32.totalorder %s16, 3
        %s153 = scalar_select %p152, %s16, 3
        %s154 = smul.addr %s153, 8
        %s155 = scalar_lea.vmem %s1, %s154
        %v156 = vld [vmem:[%s151] sm:$0xff]
        %v157 = vld [vmem:[%s155] sm:$0xff]
        %v158 = vlaneseq
        %v159 = vand.u32 %v158, 127
        %160 = vset.pattern.permute.xlu0 0
        %161 = vperm.xlu0 %160, %v157
        %v162 = vpop.permute.xlu0 %161
        %vm163 = vcmp.eq.s32.totalorder %v159, %v162
        %v164 = vsel %vm163, 0.3, 0.0
        %v165 = vsub.f32 %v156, %v164
        %v166 = vmul.f32 %v165, 20.0
        %167 = vmax.xlane.f32.xlu0 %v166
        %v168 = vpop.xlane.xlu0 %167
        %v169 = vsub.f32 %v166, %v168
        %v170 = vmul.f32 %v169, 1.442695
        %v171 = vpow.pop %v170
        %172 = vadd.xlane.f32.xlu0 %v171
        %v173 = vpop.xlane.xlu0 %172
        %v174 = vrcp.pop %v173
        %v175 = vmul.f32 %v171, %v174
        %176 = vst [vmem:[%s147] sm:$0xff] %v175
        %s177 = sand.u32 %s76, 1
        %s178 = scalar_lea.sflag [#allocation3], %s177
        %s179 = sand.u32 %s76, 1
        %s180 = smul.addr %s179, 8
        %s181 = scalar_lea.vmem [#allocation2], %s180
        // Predicated region
        $region29: #{tpu_custom_call.1} parent=27 // pred_check
          %p182 = pneg %p86
        $region30: #{tpu_custom_call.1} parent=27 // pred_check_branch
          %184 = sbr.rel (%p182) target = $region32
        $region31: #{tpu_custom_call.1} parent=27 // pred_region
          %s186 = ssub.s32 128, 128
          %187 = vsyncadd %s178, %s186
          %s188 = smul.addr %s16, 128
          %s189 = scalar_lea.hbm %s2, %s188
          %s191 = sshll.u32 %s181, 4
          %s192 = int_to_ptr.vmem [resolvable:$true] %s191
          %194 = dma.vmem_to_hbm [thread:$0]  %s192, 128, %s189, %s178
        $region32: #{tpu_custom_call.1} parent=27 // pred_fallthru
          _
      $region28: #{tpu_custom_call.1} parent=5 // pred_fallthru
        _
      %p195 = scmp.le.s32.totalorder 2, %s11
      // Predicated region
      $region33: #{tpu_custom_call.1} parent=5 // pred_check
        %p196 = pneg %p195
      $region34: #{tpu_custom_call.1} parent=5 // pred_check_branch
        %198 = sbr.rel (%p196) target = $region36
      $region35: #{tpu_custom_call.1} parent=5 // pred_region
        %s199 = ssub.s32 %s11, 2
        // Predicated region
        $region37: #{tpu_custom_call.1} parent=35 // pred_check
          %p200 = pneg %p92
        $region38: #{tpu_custom_call.1} parent=35 // pred_check_branch
          %202 = sbr.rel (%p200) target = $region40
        $region39: #{tpu_custom_call.1} parent=35 // pred_region
          %s203 = sand.u32 %s77, 1
          %s204 = scalar_lea.sflag [#allocation3], %s203
          %s205 = sand.u32 %s77, 1
          %s206 = smul.addr %s205, 8
          %s207 = scalar_lea.vmem [#allocation2], %s206
          %208 = dma.done %s204, 128
        $region40: #{tpu_custom_call.1} parent=35 // pred_fallthru
          _
      $region36: #{tpu_custom_call.1} parent=5 // pred_fallthru
        _
    $region6: #{tpu_custom_call.1} parent=1 // loop_footer
      %s15 = sadd.s32 1, %s11
    $region7: #{tpu_custom_call.1} parent=1 // loop_footer_branch
      %10 = sbr.rel target = $region3
    $region8: #{tpu_custom_call.1} parent=1 // loop_exit
      _
    %209 = vsyncpa [#allocation3], 1
    %s210 = scalar_lea.sflag [#allocation3], 1
    %211 = vsyncpa %s210, 1

</llo_original>
